<compile_context>
chip_gen: v7x
topology: tpu7x:2x2x1
jax: 0.10.0
libtpu: 0.0.40
codegen_flags: <defaults>
</compile_context>

<pallas_src>
import functools

import jax
import jax.numpy as jnp
from jax.experimental import pallas as pl
from jax.experimental.pallas import tpu as pltpu


# ----------------------------------------------------------------------------
# Small host-side helpers
# ----------------------------------------------------------------------------
def _cdiv(a, b):
    return -(-a // b)


def _round_up(x, m):
    return _cdiv(x, m) * m


def _layout_bytes(rows, cols, dtype):
    """VMEM bytes of a (rows, cols) block incl. (sublane, lane) layout padding."""
    item = jnp.dtype(dtype).itemsize
    sublane = max(8, 32 // item)  # 8 for f32, 16 for bf16
    return (_round_up(max(int(rows), 1), sublane)
            * _round_up(max(int(cols), 1), 128) * item)


def _vmem_policy():
    """Returns (vmem ceiling we allow ourselves to request, prefer_two_row_tiles)."""
    cap = None
    try:
        cap = getattr(pltpu.get_tpu_info(), "vmem_capacity_bytes", None)
    except Exception:
        cap = None
    if cap is None:
        return 48 << 20, True  # unknown generation: v7x-safe defaults
    cap = int(cap)
    if cap <= (80 << 20):
        # v7x-class: 64 MiB VMEM per TensorCore, 2 TensorCores per chip.
        return min(cap - (12 << 20), 48 << 20), True
    # v5e / v6e: 128 MiB VMEM, single TensorCore.
    return 100 << 20, False


# ----------------------------------------------------------------------------
# Prep kernel: masked_w = (weight * prune(mask)).T   (computed once per call)
# Input arrays are already zero padded to (out_pad, in_pad); output is the
# transposed, padded, masked weight in the matmul dtype.
# ----------------------------------------------------------------------------
def _prep_masked_weight_kernel(w_ref, m_ref, o_ref, *, l1, training):
    m = m_ref[...]
    if not training:
        # eval-mode prune: zero mask entries with |m| < l1 (pad entries stay 0)
        m = jnp.where(jnp.abs(m) < l1, jnp.zeros_like(m), m)
    o_ref[...] = (w_ref[...] * m).T.astype(o_ref.dtype)


def _prep_masked_weight(weight_p, mask_p, *, l1, training, out_dtype, vmem_ceiling):
    out_pad, in_pad = weight_p.shape
    t_out = min(out_pad, 512)                  # multiple of 128
    t_in = in_pad if in_pad <= 1024 else 1024  # multiple of 8 or full extent
    grid = (_cdiv(out_pad, t_out), _cdiv(in_pad, t_in))

    vmem_est = (2 * 2 * _layout_bytes(t_out, t_in, weight_p.dtype)
                + 2 * _layout_bytes(t_in, t_out, out_dtype))
    vmem_limit = int(min(vmem_ceiling, max(vmem_est + (4 << 20), 16 << 20)))

    return pl.pallas_call(
        functools.partial(_prep_masked_weight_kernel, l1=l1, training=training),
        out_shape=jax.ShapeDtypeStruct((in_pad, out_pad), out_dtype),
        grid_spec=pltpu.PrefetchScalarGridSpec(
            num_scalar_prefetch=0,
            grid=grid,
            in_specs=[
                pl.BlockSpec((t_out, t_in), lambda j, i: (j, i)),
                pl.BlockSpec((t_out, t_in), lambda j, i: (j, i)),
            ],
            out_specs=pl.BlockSpec((t_in, t_out), lambda j, i: (i, j)),
        ),
        compiler_params=pltpu.CompilerParams(
            dimension_semantics=("parallel", "parallel"),
            vmem_limit_bytes=vmem_limit,
        ),
    )(weight_p, mask_p)


# ----------------------------------------------------------------------------
# Main kernels: y = x @ masked_w + bias   (store only the valid out_ch columns)
# ----------------------------------------------------------------------------
def _masked_linear_kernel(x_ref, w_ref, b_ref, o_ref, *, out_cols, cast_bf16):
    x = x_ref[...]
    if cast_bf16:
        x = x.astype(jnp.bfloat16)
    acc = jnp.dot(x, w_ref[...], preferred_element_type=jnp.float32)
    if acc.shape[1] != out_cols:
        acc = acc[:, :out_cols]              # drop lane-pad columns before store
    o_ref[...] = (acc + b_ref[...]).astype(o_ref.dtype)


def _masked_linear_kernel_ksplit(x_ref, w_ref, b_ref, o_ref, acc_ref, *,
                                 out_cols, in_cols, k_tile, mask_k, cast_bf16):
    k = pl.program_id(1)

    @pl.when(k == 0)
    def _():
        acc_ref[...] = jnp.zeros_like(acc_ref)

    x = x_ref[...]
    if mask_k:
        # Ragged reduction dim: lanes >= in_cols of the last K block read
        # unspecified data; zero them (jnp.where also squashes NaN/Inf garbage).
        col = jax.lax.broadcasted_iota(jnp.int32, x.shape, 1) + k * k_tile
        x = jnp.where(col < in_cols, x, jnp.zeros_like(x))
    if cast_bf16:
        x = x.astype(jnp.bfloat16)
    acc_ref[...] += jnp.dot(x, w_ref[...], preferred_element_type=jnp.float32)

    @pl.when(k == pl.num_programs(1) - 1)
    def _():
        acc = acc_ref[...]
        if acc.shape[1] != out_cols:
            acc = acc[:, :out_cols]
        o_ref[...] = (acc + b_ref[...]).astype(o_ref.dtype)


def _pick_row_tile(n, requested, prefer_two_steps):
    requested = max(8, (int(requested) // 8) * 8)
    if n <= 8:
        return n
    if not prefer_two_steps:
        # Single TensorCore: biggest tile that covers n (fewer grid steps).
        return n if n <= requested else requested
    # Two TensorCores (v7x-class): >= 2 near-equal row tiles, each a multiple of 8.
    g = max(2, _cdiv(n, requested))
    if g % 2:
        g += 1
    return max(8, _round_up(_cdiv(n, g), 8))


# ----------------------------------------------------------------------------
# Wrapper
# ----------------------------------------------------------------------------
def masked_gcn_linear(x, weight, mask, bias, *, l1=0.001, training=False,
                      row_tile=None, use_bf16_matmul=False, k_tile=None):
    """Pallas TPU implementation of MaksedGCNLinear.forward.

    x:      [..., in_channels]
    weight: [out_channels, in_channels]
    mask:   [out_channels, in_channels]
    bias:   [out_channels] or None
    k_tile: optional reduction tile (multiple of 128) forcing the K-split path
            (mainly for testing; large in_channels trigger it automatically).
    Note: use_bf16_matmul stores the masked weight rounded to bf16 (f32 accumulate),
    so results deviate slightly from the f32 PyTorch reference.
    """
    out_ch, in_ch = weight.shape
    assert mask.shape == weight.shape
    assert x.shape[-1] == in_ch
    lead_shape = x.shape[:-1]
    x2 = x.reshape(-1, in_ch)
    n = x2.shape[0]

    out_dtype = x.dtype
    w_dtype = jnp.bfloat16 if use_bf16_matmul else jnp.float32
    x_item = jnp.dtype(x.dtype).itemsize

    ceiling, prefer_two = _vmem_policy()
    if row_tile is None:
        row_tile = 512 if prefer_two else 1024

    out_pad = _round_up(out_ch, 128)  # lane-dense weight columns / MXU accumulator

    # ---- decide whether to split the reduction (K) dimension -----------------
    split, tk = False, None
    if k_tile is not None:
        tk = int(k_tile)
        assert tk % 128 == 0, "k_tile must be a multiple of 128"
        split = _round_up(in_ch, 128) > tk
    elif _layout_bytes(in_ch, out_pad, w_dtype) > int(0.45 * ceiling):
        for cand in (2048, 1024, 512, 256, 128):
            if 2 * _layout_bytes(cand, out_pad, w_dtype) <= int(0.4 * ceiling):
                tk = cand
                break
        else:
            tk = 128
        split = _round_up(in_ch, 128) > tk
    in_pad = tk * _cdiv(in_ch, tk) if split else in_ch
    if not split:
        tk = None

    # ---- one-time prep: masked_w = (weight * prune(mask)).T, zero padded -----
    wf = weight.astype(jnp.float32)
    mf = mask.astype(jnp.float32)
    if out_pad != out_ch or in_pad != in_ch:
        pad = ((0, out_pad - out_ch), (0, in_pad - in_ch))
        wf = jnp.pad(wf, pad)
        mf = jnp.pad(mf, pad)
    wm = _prep_masked_weight(wf, mf, l1=l1, training=training,
                             out_dtype=w_dtype, vmem_ceiling=ceiling)

    if bias is None:
        bias2d = jnp.zeros((1, out_ch), jnp.float32)
    else:
        bias2d = bias.astype(jnp.float32).reshape(1, out_ch)

    # ---- row tile + layout-aware VMEM budget ----------------------------------
    tm = _pick_row_tile(n, row_tile, prefer_two)

    def vmem_bytes(tm_):
        bias_b = _layout_bytes(1, out_ch, jnp.float32)
        out_b = 2 * _layout_bytes(tm_, out_ch, out_dtype)
        if split:
            return (2 * _layout_bytes(tm_, tk, x.dtype)
                    + 2 * _layout_bytes(tk, out_pad, w_dtype)
                    + bias_b + out_b
                    + _layout_bytes(tm_, out_pad, jnp.float32))  # accumulator
        return (2 * _layout_bytes(tm_, in_ch, x.dtype)
                + _layout_bytes(in_pad, out_pad, w_dtype)        # single-buffered
                + bias_b + out_b)

    budget = ceiling - (4 << 20)
    while tm > 8 and vmem_bytes(tm) > budget:
        new_tm = max(8, _round_up(max(tm // 2, 8), 8))
        if new_tm >= tm:
            break
        tm = new_tm
    vmem_limit = int(min(ceiling, max(vmem_bytes(tm) + (6 << 20), 16 << 20)))

    cost = pl.CostEstimate(
        flops=int(2 * n * in_pad * out_pad),
        transcendentals=0,
        bytes_accessed=int(n * in_ch * x_item
                           + in_pad * out_pad * jnp.dtype(w_dtype).itemsize
                           + out_ch * 4
                           + n * out_ch * jnp.dtype(out_dtype).itemsize),
    )

    if split:
        nk = in_pad // tk
        grid = (_cdiv(n, tm), nk)
        kernel = functools.partial(
            _masked_linear_kernel_ksplit, out_cols=out_ch, in_cols=in_ch,
            k_tile=tk, mask_k=(in_pad != in_ch), cast_bf16=use_bf16_matmul)
        in_specs = [
            pl.BlockSpec((tm, tk), lambda i, k: (i, k)),          # x row/K tile
            pl.BlockSpec((tk, out_pad), lambda i, k: (k, 0)),     # weight K slab
            pl.BlockSpec((1, out_ch), lambda i, k: (0, 0),
                         pipeline_mode=pl.Buffered(1)),           # bias (invariant)
        ]
        out_specs = pl.BlockSpec((tm, out_ch), lambda i, k: (i, 0))
        scratch = [pltpu.VMEM((tm, out_pad), jnp.float32)]
        dims = ("parallel", "arbitrary")
    else:
        grid = (_cdiv(n, tm),)
        kernel = functools.partial(
            _masked_linear_kernel, out_cols=out_ch, cast_bf16=use_bf16_matmul)
        in_specs = [
            pl.BlockSpec((tm, in_ch), lambda i: (i, 0)),          # x row tile
            pl.BlockSpec((in_pad, out_pad), lambda i: (0, 0),
                         pipeline_mode=pl.Buffered(1)),           # weight (invariant)
            pl.BlockSpec((1, out_ch), lambda i: (0, 0),
                         pipeline_mode=pl.Buffered(1)),           # bias (invariant)
        ]
        out_specs = pl.BlockSpec((tm, out_ch), lambda i: (i, 0))
        scratch = []
        dims = ("parallel",)

    out = pl.pallas_call(
        kernel,
        out_shape=jax.ShapeDtypeStruct((n, out_ch), out_dtype),
        grid_spec=pltpu.PrefetchScalarGridSpec(
            num_scalar_prefetch=0,
            grid=grid,
            in_specs=in_specs,
            out_specs=out_specs,
            scratch_shapes=scratch,
        ),
        compiler_params=pltpu.CompilerParams(
            dimension_semantics=dims,
            vmem_limit_bytes=vmem_limit,
        ),
        cost_estimate=cost,
    )(x2, wm, bias2d)

    return out.reshape(*lead_shape, out_ch)


# ----------------------------------------------------------------------------
# Self-test
# ----------------------------------------------------------------------------
def _ref_linear(x, w_masked, b):
    y = jax.lax.dot_general(x, w_masked, (((1,), (1,)), ((), ())),
                            precision=jax.lax.Precision.HIGHEST)
    return y if b is None else y + b


if __name__ == "__main__":
    key = jax.random.PRNGKey(0)
    k_x, k_w, k_b, k_m, k_x2, k_w2, k_b2, k_m2 = jax.random.split(key, 8)

    # --- Case 1: GCN-like small shapes (ragged rows, out_ch < 128) -----------
    n, in_ch, out_ch, l1 = 100, 32, 16, 0.001
    x = jax.random.normal(k_x, (n, in_ch), jnp.float32)
    bound = 1.0 / float(in_ch) ** 0.5
    weight = jax.random.uniform(k_w, (out_ch, in_ch), jnp.float32, -bound, bound)
    bias = jax.random.uniform(k_b, (out_ch,), jnp.float32, -bound, bound)
    mask = jax.random.normal(k_m, (out_ch, in_ch), jnp.float32) * 0.01

    m_pruned = jnp.where(jnp.abs(mask) < l1, 0.0, mask)
    y_ref = _ref_linear(x, weight * m_pruned, bias)

    # eval mode (module.eval(): prune active)
    y = jax.block_until_ready(
        masked_gcn_linear(x, weight, mask, bias, l1=l1, training=False))
    assert y.shape == y_ref.shape and y.dtype == y_ref.dtype
    assert bool(jnp.allclose(y, y_ref, atol=1e-4, rtol=1e-4))

    # training mode (prune is identity on the mask)
    y_tr = jax.block_until_ready(
        masked_gcn_linear(x, weight, mask, bias, l1=l1, training=True))
    assert bool(jnp.allclose(y_tr, _ref_linear(x, weight * mask, bias),
                             atol=1e-4, rtol=1e-4))

    # bias=None path
    y_nb = jax.block_until_ready(
        masked_gcn_linear(x, weight, mask, None, l1=l1, training=False))
    assert bool(jnp.allclose(y_nb, _ref_linear(x, weight * m_pruned, None),
                             atol=1e-4, rtol=1e-4))

    # bf16 weight/activation fast path (f32 accumulation, looser tolerance)
    y_bf = jax.block_until_ready(
        masked_gcn_linear(x, weight, mask, bias, l1=l1, training=False,
                          use_bf16_matmul=True))
    assert bool(jnp.allclose(y_bf, y_ref, atol=3e-2, rtol=3e-2))

    # --- Case 2: forced K-split path (ragged K, padded out columns) ----------
    n2, in2, out2 = 200, 320, 200
    x2 = jax.random.normal(k_x2, (n2, in2), jnp.float32)
    w2 = jax.random.uniform(k_w2, (out2, in2), jnp.float32, -0.1, 0.1)
    b2 = jax.random.uniform(k_b2, (out2,), jnp.float32, -0.1, 0.1)
    m2 = jax.random.normal(k_m2, (out2, in2), jnp.float32) * 0.01
    m2p = jnp.where(jnp.abs(m2) < l1, 0.0, m2)
    y2_ref = _ref_linear(x2, w2 * m2p, b2)

    y2 = jax.block_until_ready(
        masked_gcn_linear(x2, w2, m2, b2, l1=l1, training=False, k_tile=128))
    assert y2.shape == y2_ref.shape
    assert bool(jnp.allclose(y2, y2_ref, atol=2e-4, rtol=2e-4))

    print("KERNEL_OK")
</pallas_src>

<mosaic_0001>
module attributes {stable_mosaic.version = 11 : i64} {
  func.func @_prep_masked_weight_kernel(%arg0: i32, %arg1: i32, %arg2: memref<128x32xf32, #tpu.memory_space<vmem>>, %arg3: memref<128x32xf32, #tpu.memory_space<vmem>>, %arg4: memref<32x128xf32, #tpu.memory_space<vmem>>) attributes {dimension_semantics = [#tpu.dimension_semantics<parallel>, #tpu.dimension_semantics<parallel>], iteration_bounds = array<i64: 1, 1>, scalar_prefetch = 0 : i64, scratch_operands = 0 : i64, tpu.core_type = #tpu.core_type<tc>, window_params = [{transform_indices = @transform_0, window_bounds = array<i64: 128, 32>}, {transform_indices = @transform_1, window_bounds = array<i64: 128, 32>}, {transform_indices = @transform_2, window_bounds = array<i64: 32, 128>}]} {
    %c0 = arith.constant 0 : index
    %c0_0 = arith.constant 0 : index
    %0 = vector.load %arg3[%c0, %c0_0] : memref<128x32xf32, #tpu.memory_space<vmem>>, vector<128x32xf32>
    %1 = math.absf %0 : vector<128x32xf32>
    %cst = arith.constant 1.000000e-03 : f32
    %2 = vector.broadcast %cst : f32 to vector<128x32xf32>
    %3 = arith.cmpf olt, %1, %2 : vector<128x32xf32>
    %cst_1 = arith.constant 0.000000e+00 : f32
    %4 = vector.broadcast %cst_1 : f32 to vector<128x32xf32>
    %5 = arith.select %3, %4, %0 : vector<128x32xi1>, vector<128x32xf32>
    %c0_2 = arith.constant 0 : index
    %c0_3 = arith.constant 0 : index
    %6 = vector.load %arg2[%c0_2, %c0_3] : memref<128x32xf32, #tpu.memory_space<vmem>>, vector<128x32xf32>
    %7 = arith.mulf %6, %5 : vector<128x32xf32>
    %8 = tpu.transpose %7, [1, 0] : vector<128x32xf32> -> vector<32x128xf32>
    %c0_4 = arith.constant 0 : index
    %c0_5 = arith.constant 0 : index
    %9 = vector.load %arg4[%c0_4, %c0_5] : memref<32x128xf32, #tpu.memory_space<vmem>>, vector<32x128xf32>
    tpu.vector_store %arg4[%c0_4, %c0_5], %8 {strides = array<i32>} : memref<32x128xf32, #tpu.memory_space<vmem>>, vector<32x128xf32>,
    return
  }
  func.func @transform_0(%arg0: i32, %arg1: i32) -> (i32, i32) {
    %c0_i32 = arith.constant 0 : i32
    return %arg0, %arg1 : i32, i32
  }
  func.func @transform_1(%arg0: i32, %arg1: i32) -> (i32, i32) {
    %c0_i32 = arith.constant 0 : i32
    return %arg0, %arg1 : i32, i32
  }
  func.func @transform_2(%arg0: i32, %arg1: i32) -> (i32, i32) {
    %c0_i32 = arith.constant 0 : i32
    return %arg1, %arg0 : i32, i32
  }
}

</mosaic_0001>

<llo_original>
// kernel: tpu_custom_call.1
$region0: #{tpu_custom_call.1}
  #allocation0 [shape = 'u32[]', space=smem, size = 0x4, offset = 0x4, fixed_abs, tag = 'smem constant byte address 0x4 - core index']
  #allocation1 [shape = 'u32[144,128]{1,0:T(1,128)}', space=vmem, size = 0x12000, scoped, tag = 'internal scratch']
  %s0 = inlined_call_operand.vmem [shape: f32[128,32], index: 0, kind: input, shape index: {}]
  %s1 = inlined_call_operand.vmem [shape: f32[128,32], index: 1, kind: input, shape index: {}]
  %s2 = inlined_call_operand.hbm [shape: f32[32,128], index: 2, kind: output, shape index: {}]
  %s3 = sld [smem:[#allocation0]]
  $region18: #{tpu_custom_call.1} parent=0
    _
  %s5 = ssub.s32 1, %s3
  %s6 = scalar_select 0, %s5, %s3
  $region1: #{tpu_custom_call.1} parent=0
    #allocation2 [shape = 'u8[16384]{0}', space=vmem, size = 0x4000, scoped, tag = 'output window, operand 0, single buffered']
    #allocation3 [shape = 's32[1]{0}', space=sflag, size = 0x4, scoped, tag = 'scoped memory for tpu_custom_call.1']
    %7 = vsyncpa [#allocation3], 0
    // Predicated region
    $region2: #{tpu_custom_call.1} parent=1 // pred_check
      _
    $region3: #{tpu_custom_call.1} parent=1 // pred_check_branch
      %9 = sbr.rel (0) target = $region5
    $region4: #{tpu_custom_call.1} parent=1 // pred_region
      _
    $region5: #{tpu_custom_call.1} parent=1 // pred_fallthru
      _
    // Predicated region
    $region6: #{tpu_custom_call.1} parent=1 // pred_check
      _
    $region7: #{tpu_custom_call.1} parent=1 // pred_check_branch
      %11 = sbr.rel (0) target = $region9
    $region8: #{tpu_custom_call.1} parent=1 // pred_region
      _
    $region9: #{tpu_custom_call.1} parent=1 // pred_fallthru
      _
    %v12 = vld [vmem:[%s1] sm:$0xff]
    %v13 = vld [vmem:[%s1 + $0x8] sm:$0xff]
    %v14 = vld [vmem:[%s1 + $0x10] sm:$0xff]
    %v15 = vld [vmem:[%s1 + $0x18] sm:$0xff]
    %v16 = vld [vmem:[%s1 + $0x20] sm:$0xff]
    %v17 = vld [vmem:[%s1 + $0x28] sm:$0xff]
    %v18 = vld [vmem:[%s1 + $0x30] sm:$0xff]
    %v19 = vld [vmem:[%s1 + $0x38] sm:$0xff]
    %v20 = vld [vmem:[%s1 + $0x40] sm:$0xff]
    %v21 = vld [vmem:[%s1 + $0x48] sm:$0xff]
    %v22 = vld [vmem:[%s1 + $0x50] sm:$0xff]
    %v23 = vld [vmem:[%s1 + $0x58] sm:$0xff]
    %v24 = vld [vmem:[%s1 + $0x60] sm:$0xff]
    %v25 = vld [vmem:[%s1 + $0x68] sm:$0xff]
    %v26 = vld [vmem:[%s1 + $0x70] sm:$0xff]
    %v27 = vld [vmem:[%s1 + $0x78] sm:$0xff]
    %v28 = vand.u32 2147483647, %v12
    %v29 = vand.u32 2147483647, %v13
    %v30 = vand.u32 2147483647, %v14
    %v31 = vand.u32 2147483647, %v15
    %v32 = vand.u32 2147483647, %v16
    %v33 = vand.u32 2147483647, %v17
    %v34 = vand.u32 2147483647, %v18
    %v35 = vand.u32 2147483647, %v19
    %v36 = vand.u32 2147483647, %v20
    %v37 = vand.u32 2147483647, %v21
    %v38 = vand.u32 2147483647, %v22
    %v39 = vand.u32 2147483647, %v23
    %v40 = vand.u32 2147483647, %v24
    %v41 = vand.u32 2147483647, %v25
    %v42 = vand.u32 2147483647, %v26
    %v43 = vand.u32 2147483647, %v27
    %vm44 = vcmp.lt.f32.partialorder %v28, 0.001
    %vm45 = vcmp.lt.f32.partialorder %v29, 0.001
    %vm46 = vcmp.lt.f32.partialorder %v30, 0.001
    %vm47 = vcmp.lt.f32.partialorder %v31, 0.001
    %vm48 = vcmp.lt.f32.partialorder %v32, 0.001
    %vm49 = vcmp.lt.f32.partialorder %v33, 0.001
    %vm50 = vcmp.lt.f32.partialorder %v34, 0.001
    %vm51 = vcmp.lt.f32.partialorder %v35, 0.001
    %vm52 = vcmp.lt.f32.partialorder %v36, 0.001
    %vm53 = vcmp.lt.f32.partialorder %v37, 0.001
    %vm54 = vcmp.lt.f32.partialorder %v38, 0.001
    %vm55 = vcmp.lt.f32.partialorder %v39, 0.001
    %vm56 = vcmp.lt.f32.partialorder %v40, 0.001
    %vm57 = vcmp.lt.f32.partialorder %v41, 0.001
    %vm58 = vcmp.lt.f32.partialorder %v42, 0.001
    %vm59 = vcmp.lt.f32.partialorder %v43, 0.001
    %v60 = vsel %vm44, 0.0, %v12
    %v61 = vsel %vm45, 0.0, %v13
    %v62 = vsel %vm46, 0.0, %v14
    %v63 = vsel %vm47, 0.0, %v15
    %v64 = vsel %vm48, 0.0, %v16
    %v65 = vsel %vm49, 0.0, %v17
    %v66 = vsel %vm50, 0.0, %v18
    %v67 = vsel %vm51, 0.0, %v19
    %v68 = vsel %vm52, 0.0, %v20
    %v69 = vsel %vm53, 0.0, %v21
    %v70 = vsel %vm54, 0.0, %v22
    %v71 = vsel %vm55, 0.0, %v23
    %v72 = vsel %vm56, 0.0, %v24
    %v73 = vsel %vm57, 0.0, %v25
    %v74 = vsel %vm58, 0.0, %v26
    %v75 = vsel %vm59, 0.0, %v27
    %v76 = vld [vmem:[%s0] sm:$0xff]
    %v77 = vld [vmem:[%s0 + $0x8] sm:$0xff]
    %v78 = vld [vmem:[%s0 + $0x10] sm:$0xff]
    %v79 = vld [vmem:[%s0 + $0x18] sm:$0xff]
    %v80 = vld [vmem:[%s0 + $0x20] sm:$0xff]
    %v81 = vld [vmem:[%s0 + $0x28] sm:$0xff]
    %v82 = vld [vmem:[%s0 + $0x30] sm:$0xff]
    %v83 = vld [vmem:[%s0 + $0x38] sm:$0xff]
    %v84 = vld [vmem:[%s0 + $0x40] sm:$0xff]
    %v85 = vld [vmem:[%s0 + $0x48] sm:$0xff]
    %v86 = vld [vmem:[%s0 + $0x50] sm:$0xff]
    %v87 = vld [vmem:[%s0 + $0x58] sm:$0xff]
    %v88 = vld [vmem:[%s0 + $0x60] sm:$0xff]
    %v89 = vld [vmem:[%s0 + $0x68] sm:$0xff]
    %v90 = vld [vmem:[%s0 + $0x70] sm:$0xff]
    %v91 = vld [vmem:[%s0 + $0x78] sm:$0xff]
    %v92 = vmul.f32 %v76, %v60
    %v93 = vmul.f32 %v77, %v61
    %v94 = vmul.f32 %v78, %v62
    %v95 = vmul.f32 %v79, %v63
    %v96 = vmul.f32 %v80, %v64
    %v97 = vmul.f32 %v81, %v65
    %v98 = vmul.f32 %v82, %v66
    %v99 = vmul.f32 %v83, %v67
    %v100 = vmul.f32 %v84, %v68
    %v101 = vmul.f32 %v85, %v69
    %v102 = vmul.f32 %v86, %v70
    %v103 = vmul.f32 %v87, %v71
    %v104 = vmul.f32 %v88, %v72
    %v105 = vmul.f32 %v89, %v73
    %v106 = vmul.f32 %v90, %v74
    %v107 = vmul.f32 %v91, %v75
    %108 = vxpose.xlu0.b32.start [1/16] %v92, 128
    %109 = vxpose.xlu0.b32.cont [2/16] %v93, 128
    %110 = vxpose.xlu0.b32.cont [3/16] %v94, 128
    %111 = vxpose.xlu0.b32.cont [4/16] %v95, 128
    %112 = vxpose.xlu0.b32.cont [5/16] %v96, 128
    %113 = vxpose.xlu0.b32.cont [6/16] %v97, 128
    %114 = vxpose.xlu0.b32.cont [7/16] %v98, 128
    %115 = vxpose.xlu0.b32.cont [8/16] %v99, 128
    %116 = vxpose.xlu0.b32.cont [9/16] %v100, 128
    %117 = vxpose.xlu0.b32.cont [10/16] %v101, 128
    %118 = vxpose.xlu0.b32.cont [11/16] %v102, 128
    %119 = vxpose.xlu0.b32.cont [12/16] %v103, 128
    %120 = vxpose.xlu0.b32.cont [13/16] %v104, 128
    %121 = vxpose.xlu0.b32.cont [14/16] %v105, 128
    %122 = vxpose.xlu0.b32.cont [15/16] %v106, 128
    %123 = vxpose.xlu0.b32.end [16/16] %v107, 128
    %v124 = vpop.trf.xlu0
    %v125 = vpop.trf.xlu0
    %v126 = vpop.trf.xlu0
    %v127 = vpop.trf.xlu0
    %v128 = vpop.trf.xlu0
    %v129 = vpop.trf.xlu0
    %v130 = vpop.trf.xlu0
    %v131 = vpop.trf.xlu0
    %v132 = vpop.trf.xlu0
    %v133 = vpop.trf.xlu0
    %v134 = vpop.trf.xlu0
    %v135 = vpop.trf.xlu0
    %v136 = vpop.trf.xlu0
    %v137 = vpop.trf.xlu0
    %v138 = vpop.trf.xlu0
    %v139 = vpop.trf.xlu0
    %140 = vst [vmem:[#allocation2] sm:$0xff] %v124
    %141 = vst [vmem:[#allocation2 + $0x8] sm:$0xff] %v125
    %142 = vst [vmem:[#allocation2 + $0x10] sm:$0xff] %v126
    %143 = vst [vmem:[#allocation2 + $0x18] sm:$0xff] %v127
    // Predicated region
    $region10: #{tpu_custom_call.1} parent=1 // pred_check
      _
    $region11: #{tpu_custom_call.1} parent=1 // pred_check_branch
      %145 = sbr.rel (0) target = $region13
    $region12: #{tpu_custom_call.1} parent=1 // pred_region
      %s147 = ssub.s32 512, 512
      %148 = vsyncadd [#allocation3], %s147
      %s149 = sshll.u32 [#allocation2], 4
      %s150 = int_to_ptr.vmem [resolvable:$true] %s149
      %155 = dma.vmem_to_hbm [thread:$0]  %s150, 512, %s2, [#allocation3], 128, 128, 8
    $region13: #{tpu_custom_call.1} parent=1 // pred_fallthru
      _
    // Predicated region
    $region14: #{tpu_custom_call.1} parent=1 // pred_check
      _
    $region15: #{tpu_custom_call.1} parent=1 // pred_check_branch
      %157 = sbr.rel (0) target = $region17
    $region16: #{tpu_custom_call.1} parent=1 // pred_region
      %158 = dma.done [#allocation3], 512
    $region17: #{tpu_custom_call.1} parent=1 // pred_fallthru
      _
    %159 = vsyncpa [#allocation3], 1

</llo_original>
